<compile_context>
chip_gen: v6e
topology: v6e:2x2x1
jax: 0.10.0
libtpu: 0.0.40
codegen_flags: <defaults>
</compile_context>

<pallas_src>
import math
import functools

import jax
import jax.numpy as jnp
from jax.experimental import pallas as pl
from jax.experimental.pallas import tpu as pltpu


def _round_up(v: int, m: int) -> int:
    return (v + m - 1) // m * m


def _matmul_kernel(x_ref, w_ref, o_ref, acc_ref):
    """One (tm, tn) output tile; K-reduction along grid axis 2 into a VMEM accumulator."""

    @pl.when(pl.program_id(2) == 0)
    def _():
        acc_ref[...] = jnp.zeros_like(acc_ref)

    acc_ref[...] += jnp.dot(
        x_ref[...], w_ref[...], preferred_element_type=jnp.float32
    )

    @pl.when(pl.program_id(2) == pl.num_programs(2) - 1)
    def _():
        o_ref[...] = acc_ref[...].astype(o_ref.dtype)


def dual_linear_forward(x, y, w, *, tm=256, tn=256, tk=256):
    """x:(N,d_model), y:(M,d_model), w:(out_size,d_model) -> (x@W.T, y@W.T).

    Both projections share W, so they are fused into a single matmul over the
    row-concatenated input. Inputs/outputs are padded to lane-dense shapes for
    the kernel and sliced back outside.
    """
    n, d_model = x.shape
    m, d_model_y = y.shape
    assert d_model_y == d_model
    out_size, d_model_w = w.shape
    assert d_model_w == d_model

    rows = n + m
    xy = jnp.concatenate([x, y], axis=0)          # (rows, d_model)
    w_t = jnp.swapaxes(w, 0, 1)                   # (d_model, out_size): transpose once, in XLA

    # Lane/sublane-dense padded sizes.
    rows_p = _round_up(rows, 8)
    k_p = _round_up(d_model, 128)
    out_p = _round_up(out_size, 128)

    # Clamp tiles to the (padded) problem, then make padded dims tile multiples.
    tm = min(tm, rows_p)
    tn = min(tn, out_p)
    tk = min(tk, k_p)
    rows_p = _round_up(rows_p, tm)
    k_p = _round_up(k_p, tk)
    out_p = _round_up(out_p, tn)

    # Zero-pad (zeros contribute nothing to the contraction, so results are exact).
    xy_pad = jnp.zeros((rows_p, k_p), xy.dtype).at[:rows, :d_model].set(xy)
    w_pad = jnp.zeros((k_p, out_p), w_t.dtype).at[:d_model, :out_size].set(w_t)

    grid = (rows_p // tm, out_p // tn, k_p // tk)

    cost = pl.CostEstimate(
        flops=2 * rows_p * k_p * out_p,
        transcendentals=0,
        bytes_accessed=4 * (rows_p * k_p + k_p * out_p + rows_p * out_p),
    )

    out_padded = pl.pallas_call(
        _matmul_kernel,
        out_shape=jax.ShapeDtypeStruct((rows_p, out_p), jnp.float32),
        grid_spec=pltpu.PrefetchScalarGridSpec(
            num_scalar_prefetch=0,
            grid=grid,
            in_specs=[
                pl.BlockSpec((tm, tk), lambda i, j, k: (i, k)),
                pl.BlockSpec((tk, tn), lambda i, j, k: (k, j)),
            ],
            out_specs=pl.BlockSpec((tm, tn), lambda i, j, k: (i, j)),
            scratch_shapes=[pltpu.VMEM((tm, tn), jnp.float32)],
        ),
        compiler_params=pltpu.CompilerParams(
            # row/out tiles are independent -> parallel (lets v7x shard across its 2 TCs);
            # K is the reduction -> arbitrary, and kept last in the grid.
            dimension_semantics=("parallel", "parallel", "arbitrary"),
            vmem_limit_bytes=64 * 1024 * 1024,
        ),
        cost_estimate=cost,
    )(xy_pad, w_pad)

    out = out_padded[:rows, :out_size]
    return out[:n], out[n:rows]


def init_weight(key, d_model, output_size):
    # nn.init.kaiming_uniform_(W, a=sqrt(5)) with fan_in = d_model
    # bound = sqrt(6 / ((1 + a^2) * fan_in)) = 1 / sqrt(fan_in)
    bound = 1.0 / math.sqrt(d_model)
    return jax.random.uniform(
        key, (output_size, d_model), dtype=jnp.float32,
        minval=-bound, maxval=bound,
    )


# TODO(synk): the surrounding Transformer pieces (MultiHeadedAttention, Encoder,
# PositionwiseFeedForward) are not defined in the provided spec; only the shared-weight
# dual projection block is implemented here as a Pallas kernel.

if __name__ == "__main__":
    d_model = 32
    output_size = 64
    n_rows_x = 8
    n_rows_y = 8

    key = jax.random.PRNGKey(0)
    kw, kx, ky = jax.random.split(key, 3)

    w = init_weight(kw, d_model, output_size)
    x = jax.random.normal(kx, (n_rows_x, d_model), dtype=jnp.float32)
    y = jax.random.normal(ky, (n_rows_y, d_model), dtype=jnp.float32)

    fwd = jax.jit(functools.partial(dual_linear_forward))
    out_x, out_y = fwd(x, y, w)
    jax.block_until_ready((out_x, out_y))

    # Reference check in plain JAX.
    ref_x = x @ w.T
    ref_y = y @ w.T
    assert out_x.shape == (n_rows_x, output_size)
    assert out_y.shape == (n_rows_y, output_size)
    assert jnp.allclose(out_x, ref_x, atol=1e-5, rtol=1e-5)
    assert jnp.allclose(out_y, ref_y, atol=1e-5, rtol=1e-5)

    print("KERNEL_OK")
</pallas_src>

<mosaic_0001>
module attributes {stable_mosaic.version = 11 : i64} {
  func.func @_matmul_kernel(%arg0: i32, %arg1: i32, %arg2: i32, %arg3: memref<16x128xf32, #tpu.memory_space<vmem>>, %arg4: memref<128x128xf32, #tpu.memory_space<vmem>>, %arg5: memref<16x128xf32, #tpu.memory_space<vmem>>, %arg6: memref<16x128xf32, #tpu.memory_space<vmem>>) attributes {dimension_semantics = [#tpu.dimension_semantics<parallel>, #tpu.dimension_semantics<parallel>, #tpu.dimension_semantics<arbitrary>], iteration_bounds = array<i64: 1, 1, 1>, scalar_prefetch = 0 : i64, scratch_operands = 1 : i64, tpu.core_type = #tpu.core_type<tc>, window_params = [{transform_indices = @transform_0, window_bounds = array<i64: 16, 128>}, {transform_indices = @transform_1, window_bounds = array<i64: 128, 128>}, {transform_indices = @transform_2, window_bounds = array<i64: 16, 128>}]} {
    %c0_i32 = arith.constant 0 : i32
    %0 = arith.cmpi eq, %arg2, %c0_i32 : i32
    %1 = arith.extui %0 : i1 to i32
    %c0_i32_0 = arith.constant 0 : i32
    %2 = arith.cmpi ne, %1, %c0_i32_0 : i32
    scf.if %2 {
      %cst_10 = arith.constant 0.000000e+00 : f32
      %12 = vector.broadcast %cst_10 : f32 to vector<16x128xf32>
      %c0_11 = arith.constant 0 : index
      %c0_12 = arith.constant 0 : index
      %13 = vector.load %arg6[%c0_11, %c0_12] : memref<16x128xf32, #tpu.memory_space<vmem>>, vector<16x128xf32>
      tpu.vector_store %arg6[%c0_11, %c0_12], %12 {strides = array<i32>} : memref<16x128xf32, #tpu.memory_space<vmem>>, vector<16x128xf32>,
    } else {
    }
    %c0 = arith.constant 0 : index
    %c0_1 = arith.constant 0 : index
    %3 = vector.load %arg6[%c0, %c0_1] : memref<16x128xf32, #tpu.memory_space<vmem>>, vector<16x128xf32>
    %c0_2 = arith.constant 0 : index
    %c0_3 = arith.constant 0 : index
    %4 = vector.load %arg3[%c0_2, %c0_3] : memref<16x128xf32, #tpu.memory_space<vmem>>, vector<16x128xf32>
    %c0_4 = arith.constant 0 : index
    %c0_5 = arith.constant 0 : index
    %5 = vector.load %arg4[%c0_4, %c0_5] : memref<128x128xf32, #tpu.memory_space<vmem>>, vector<128x128xf32>
    %cst = arith.constant dense<0.000000e+00> : vector<16x128xf32>
    %6 = tpu.matmul %4, %5, %cst {dimension_numbers = #tpu.dot_dimension_numbers<[1], [0], [0], [1], [0, 0, 1, 1], [], []>} : vector<16x128xf32>, vector<128x128xf32>, vector<16x128xf32> -> vector<16x128xf32>
    %7 = arith.addf %3, %6 : vector<16x128xf32>
    %c0_6 = arith.constant 0 : index
    %c0_7 = arith.constant 0 : index
    %8 = vector.load %arg6[%c0_6, %c0_7] : memref<16x128xf32, #tpu.memory_space<vmem>>, vector<16x128xf32>
    tpu.vector_store %arg6[%c0_6, %c0_7], %7 {strides = array<i32>} : memref<16x128xf32, #tpu.memory_space<vmem>>, vector<16x128xf32>,
    %c0_i32_8 = arith.constant 0 : i32
    %9 = arith.cmpi eq, %arg2, %c0_i32_8 : i32
    %10 = arith.extui %9 : i1 to i32
    %c0_i32_9 = arith.constant 0 : i32
    %11 = arith.cmpi ne, %10, %c0_i32_9 : i32
    scf.if %11 {
      %c0_10 = arith.constant 0 : index
      %c0_11 = arith.constant 0 : index
      %12 = vector.load %arg6[%c0_10, %c0_11] : memref<16x128xf32, #tpu.memory_space<vmem>>, vector<16x128xf32>
      %c0_12 = arith.constant 0 : index
      %c0_13 = arith.constant 0 : index
      %13 = vector.load %arg5[%c0_12, %c0_13] : memref<16x128xf32, #tpu.memory_space<vmem>>, vector<16x128xf32>
      tpu.vector_store %arg5[%c0_12, %c0_13], %12 {strides = array<i32>} : memref<16x128xf32, #tpu.memory_space<vmem>>, vector<16x128xf32>,
    } else {
    }
    return
  }
  func.func @transform_0(%arg0: i32, %arg1: i32, %arg2: i32) -> (i32, i32) {
    %c0_i32 = arith.constant 0 : i32
    return %arg0, %arg2 : i32, i32
  }
  func.func @transform_1(%arg0: i32, %arg1: i32, %arg2: i32) -> (i32, i32) {
    %c0_i32 = arith.constant 0 : i32
    return %arg2, %arg1 : i32, i32
  }
  func.func @transform_2(%arg0: i32, %arg1: i32, %arg2: i32) -> (i32, i32) {
    %c0_i32 = arith.constant 0 : i32
    return %arg0, %arg1 : i32, i32
  }
}

</mosaic_0001>

<llo_original>
// kernel: dual_linear_forward.1
$region0: #{dual_linear_forward.1}
  #allocation0 [shape = 'u32[]', space=smem, size = 0x4, offset = 0x4, fixed_abs, tag = 'smem constant byte address 0x4 - core index']
  #allocation1 [shape = 'u32[144,128]{1,0:T(1,128)}', space=vmem, size = 0x12000, scoped, tag = 'internal scratch']
  #allocation2 [shape = 'f32[16,128]{1,0:T(8,128)}', space=vmem, size = 0x2000, scoped, tag = 'scratch operand']
  %s0 = inlined_call_operand.vmem [shape: f32[16,128], index: 0, kind: input, shape index: {}]
  %s1 = inlined_call_operand.vmem [shape: f32[128,128], index: 1, kind: input, shape index: {}]
  %s2 = inlined_call_operand.vmem [shape: f32[16,128], index: 2, kind: output, shape index: {}]
  %s3 = sld [smem:[#allocation0]]
  $region26: #{dual_linear_forward.1} parent=0
    _
  %s5 = ssub.s32 1, %s3
  %s6 = scalar_select 0, %s5, %s3
  // Predicated region
  $region2: #{dual_linear_forward.1} parent=0 // pred_check
    _
  $region3: #{dual_linear_forward.1} parent=0 // pred_check_branch
    %8 = sbr.rel (0) target = $region5
  $region4: #{dual_linear_forward.1} parent=0 // pred_region
    _
  $region5: #{dual_linear_forward.1} parent=0 // pred_fallthru
    _
  // Predicated region
  $region6: #{dual_linear_forward.1} parent=0 // pred_check
    _
  $region7: #{dual_linear_forward.1} parent=0 // pred_check_branch
    %10 = sbr.rel (0) target = $region9
  $region8: #{dual_linear_forward.1} parent=0 // pred_region
    _
  $region9: #{dual_linear_forward.1} parent=0 // pred_fallthru
    _
  %p11 = scmp.eq.s32.totalorder 0, 0
  // Predicated region
  $region10: #{dual_linear_forward.1} parent=0 // pred_check
    %p12 = pneg %p11
  $region11: #{dual_linear_forward.1} parent=0 // pred_check_branch
    %14 = sbr.rel (%p12) target = $region13
  $region12: #{dual_linear_forward.1} parent=0 // pred_region
    %15 = vst [vmem:[#allocation2] sm:$0xff] 0.0
    %16 = vst [vmem:[#allocation2 + $0x8] sm:$0xff] 0.0
  $region13: #{dual_linear_forward.1} parent=0 // pred_fallthru
    _
  %v17 = vld [vmem:[#allocation2] sm:$0xff]
  %v18 = vld [vmem:[#allocation2 + $0x8] sm:$0xff]
  %v19 = vld [vmem:[%s0] sm:$0xff]
  %v20 = vld [vmem:[%s0 + $0x8] sm:$0xff]
  %v21 = vld [vmem:[%s1] sm:$0xff]
  %v22 = vld [vmem:[%s1 + $0x8] sm:$0xff]
  %v23 = vld [vmem:[%s1 + $0x10] sm:$0xff]
  %v24 = vld [vmem:[%s1 + $0x18] sm:$0xff]
  %v25 = vld [vmem:[%s1 + $0x20] sm:$0xff]
  %v26 = vld [vmem:[%s1 + $0x28] sm:$0xff]
  %v27 = vld [vmem:[%s1 + $0x30] sm:$0xff]
  %v28 = vld [vmem:[%s1 + $0x38] sm:$0xff]
  %v29 = vld [vmem:[%s1 + $0x40] sm:$0xff]
  %v30 = vld [vmem:[%s1 + $0x48] sm:$0xff]
  %v31 = vld [vmem:[%s1 + $0x50] sm:$0xff]
  %v32 = vld [vmem:[%s1 + $0x58] sm:$0xff]
  %v33 = vld [vmem:[%s1 + $0x60] sm:$0xff]
  %v34 = vld [vmem:[%s1 + $0x68] sm:$0xff]
  %v35 = vld [vmem:[%s1 + $0x70] sm:$0xff]
  %v36 = vld [vmem:[%s1 + $0x78] sm:$0xff]
  %37 = vmatprep.subr.mxu0 0.0
  %38 = vmatpush1.msra.mxu0 %v36
  %39 = vmatprep.subr.mxu0 0.0
  %40 = vmatpush1.msra.mxu0 %v35
  %41 = vmatprep.subr.mxu0 0.0
  %42 = vmatpush1.msra.mxu0 %v34
  %43 = vmatprep.subr.mxu0 0.0
  %44 = vmatpush1.msra.mxu0 %v33
  %45 = vmatprep.subr.mxu0 0.0
  %46 = vmatpush1.msra.mxu0 %v32
  %47 = vmatprep.subr.mxu0 0.0
  %48 = vmatpush1.msra.mxu0 %v31
  %49 = vmatprep.subr.mxu0 0.0
  %50 = vmatpush1.msra.mxu0 %v30
  %51 = vmatprep.subr.mxu0 0.0
  %52 = vmatpush1.msra.mxu0 %v29
  %53 = vmatprep.subr.mxu0 0.0
  %54 = vmatpush1.msra.mxu0 %v28
  %55 = vmatprep.subr.mxu0 0.0
  %56 = vmatpush1.msra.mxu0 %v27
  %57 = vmatprep.subr.mxu0 0.0
  %58 = vmatpush1.msra.mxu0 %v26
  %59 = vmatprep.subr.mxu0 0.0
  %60 = vmatpush1.msra.mxu0 %v25
  %61 = vmatprep.subr.mxu0 0.0
  %62 = vmatpush1.msra.mxu0 %v24
  %63 = vmatprep.subr.mxu0 0.0
  %64 = vmatpush1.msra.mxu0 %v23
  %65 = vmatprep.subr.mxu0 0.0
  %66 = vmatpush1.msra.mxu0 %v22
  %67 = vmatprep.subr.mxu0 0.0
  %68 = vmatpush1.msra.mxu0 %v21
  %69 = vmatprep.subr.mxu0 0.0
  %70 = vmatpush2.msra.mxu0 0.0
  %71 = vmatprep.subr.mxu0 0.0
  %72 = vmatpush2.msra.mxu0 0.0
  %73 = vmatprep.subr.mxu0 0.0
  %74 = vmatpush2.msra.mxu0 0.0
  %75 = vmatprep.subr.mxu0 0.0
  %76 = vmatpush2.msra.mxu0 0.0
  %77 = vmatprep.subr.mxu0 0.0
  %78 = vmatpush2.msra.mxu0 0.0
  %79 = vmatprep.subr.mxu0 0.0
  %80 = vmatpush2.msra.mxu0 0.0
  %81 = vmatprep.subr.mxu0 0.0
  %82 = vmatpush2.msra.mxu0 0.0
  %83 = vmatprep.subr.mxu0 0.0
  %84 = vmatpush2.msra.mxu0 0.0
  %85 = vmatprep.subr.mxu0 0.0
  %86 = vmatpush2.msra.mxu0 0.0
  %87 = vmatprep.subr.mxu0 0.0
  %88 = vmatpush2.msra.mxu0 0.0
  %89 = vmatprep.subr.mxu0 0.0
  %90 = vmatpush2.msra.mxu0 0.0
  %91 = vmatprep.subr.mxu0 0.0
  %92 = vmatpush2.msra.mxu0 0.0
  %93 = vmatprep.subr.mxu0 0.0
  %94 = vmatpush2.msra.mxu0 0.0
  %95 = vmatprep.subr.mxu0 0.0
  %96 = vmatpush2.msra.mxu0 0.0
  %97 = vmatprep.subr.mxu0 0.0
  %98 = vmatpush2.msra.mxu0 0.0
  %99 = vmatprep.subr.mxu0 0.0
  %100 = vmatpush2.msra.mxu0 0.0
  %101 = vmatprep.mubr.f32.mxu0 0.0
  %102 = vmatmul.mubr.f32.gmra.mxu0 %v19
  %v103 = vpop.f32.mrf.mxu0
  %v104 = vadd.f32 0.0, %v103
  %v105 = vpop.f32.mrf.mxu0
  %106 = vmatprep.mubr.f32.mxu0 0.0
  %107 = vmatmul.mubr.f32.gmra.mxu0 %v20
  %v108 = vpop.f32.mrf.mxu0
  %v109 = vadd.f32 0.0, %v108
  %v110 = vpop.f32.mrf.mxu0
  %111 = vdwg.mxu0
  %v112 = vadd.f32 %v17, %v104
  %v113 = vadd.f32 %v18, %v109
  %114 = vst [vmem:[#allocation2] sm:$0xff] %v112
  %115 = vst [vmem:[#allocation2 + $0x8] sm:$0xff] %v113
  // Predicated region
  $region14: #{dual_linear_forward.1} parent=0 // pred_check
    %p116 = pneg %p11
  $region15: #{dual_linear_forward.1} parent=0 // pred_check_branch
    %118 = sbr.rel (%p116) target = $region17
  $region16: #{dual_linear_forward.1} parent=0 // pred_region
    %v119 = vld [vmem:[#allocation2] sm:$0xff]
    %v120 = vld [vmem:[#allocation2 + $0x8] sm:$0xff]
    %121 = vst [vmem:[%s2] sm:$0xff] %v119
    %122 = vst [vmem:[%s2 + $0x8] sm:$0xff] %v120
  $region17: #{dual_linear_forward.1} parent=0 // pred_fallthru
    _
  // Predicated region
  $region18: #{dual_linear_forward.1} parent=0 // pred_check
    _
  $region19: #{dual_linear_forward.1} parent=0 // pred_check_branch
    %124 = sbr.rel (0) target = $region21
  $region20: #{dual_linear_forward.1} parent=0 // pred_region
    _
  $region21: #{dual_linear_forward.1} parent=0 // pred_fallthru
    _
  // Predicated region
  $region22: #{dual_linear_forward.1} parent=0 // pred_check
    _
  $region23: #{dual_linear_forward.1} parent=0 // pred_check_branch
    %126 = sbr.rel (0) target = $region25
  $region24: #{dual_linear_forward.1} parent=0 // pred_region
    _
  $region25: #{dual_linear_forward.1} parent=0 // pred_fallthru
    _

</llo_original>
